<compile_context>
chip_gen: v6e
topology: v6e:2x2x1
jax: 0.10.0
libtpu: 0.0.40
codegen_flags: <defaults>
</compile_context>

<pallas_src>
import functools

import jax
import jax.numpy as jnp
from jax.experimental import pallas as pl
from jax.experimental.pallas import tpu as pltpu


def _round_up(x, m):
    return (x + m - 1) // m * m


def _hardswish(x):
    # x * relu6(x + 3) / 6
    return x * jnp.clip(x + 3.0, 0.0, 6.0) * (1.0 / 6.0)


def _concat_fusion_kernel(x_ref, mask_ref, w1_ref, b1_ref, w2_ref, b2_ref,
                          out_ref, *, wp, th):
    """Fused conv3x3 -> hardswish -> conv3x3 for one (batch, row-tile) block.

    x_ref   : [Cin1, P]       f32  padded input tile (2-row halo each side), pixels flat on lanes
    mask_ref: [1, P]          f32  conv2 zero-padding mask (image border / halo outside image)
    w1_ref  : [Cmid, 9*Cin1]  bf16 conv1 weights, tap-major (ky, kx, cin)
    b1_ref  : [Cmid, 1]       f32
    w2_ref  : [Cout, 9*Cmid]  bf16 conv2 weights, tap-major (ky, kx, cin)
    b2_ref  : [Cout, 1]       f32
    out_ref : [Cout, th*wp]   f32  (4 junk columns per row, stripped by the wrapper)
    """
    p = x_ref.shape[-1]

    def im2col(z):
        # z: [G, P].  Row block t = ky*3 + kx of the result holds z rotated so that
        # column p0 reads flat pixel p0 + ky*wp + kx.  Rolls run on the XLU; the
        # concat offsets are multiples of 8 sublanes (G is padded to 8).
        pieces = []
        for ky in range(3):
            for kx in range(3):
                s = ky * wp + kx
                if s == 0:
                    pieces.append(z)
                else:
                    # result[:, p0] = z[:, (p0 + s) % p]
                    pieces.append(pltpu.roll(z, shift=p - s, axis=1))
        return jnp.concatenate(pieces, axis=0)

    # ---- conv1: a single MXU matmul, K = 9 * Cin1 ----
    a1 = im2col(x_ref[...]).astype(jnp.bfloat16)
    y1 = jnp.dot(w1_ref[...], a1, preferred_element_type=jnp.float32)
    y1 = y1 + b1_ref[...]

    # ---- hardswish + conv2's zero padding (mask multiply, no VMEM staging) ----
    z = _hardswish(y1) * mask_ref[...]

    # ---- conv2: a single MXU matmul, K = 9 * Cmid ----
    a2 = im2col(z).astype(jnp.bfloat16)
    y2 = jnp.dot(w2_ref[...], a2, preferred_element_type=jnp.float32)
    y2 = y2 + b2_ref[...]

    out_ref[...] = y2[:, : th * wp]


def concat_fusion_forward(m1_nchw, m2_nchw, params, *, row_tile=8):
    """m1, m2: [N, C, H, W] float32 (PyTorch NCHW).  Returns [N, C, H, W] float32."""
    w1, b1, w2, b2 = params["w1"], params["b1"], params["w2"], params["b2"]
    N, C, H, W = m1_nchw.shape
    C2 = 2 * C

    th = row_tile if (H % row_tile == 0 and H >= row_tile) else H
    nt = H // th
    wp = W + 4                        # width padded by 2 on each side
    cin1 = _round_up(C2, 8)           # conv1 input channels, sublane aligned
    cmid = _round_up(C, 8)            # conv1 output channels computed (padded rows are zero)
    p_in = (th + 4) * wp              # flat pixels per tile (rows include 2-row halo each side)
    p_pad = _round_up(p_in, 128)      # lane-dense last dim

    # ---- activations: NCHW -> channels on sublanes, flat padded pixels on lanes ----
    x = jnp.concatenate([m1_nchw, m2_nchw], axis=1).astype(jnp.float32)     # [N, 2C, H, W]
    xpad = jnp.pad(x, ((0, 0), (0, cin1 - C2), (2, 2), (2, 2)))             # [N, Cin1, H+4, W+4]
    tiles = jnp.stack(
        [xpad[:, :, t * th: t * th + th + 4, :] for t in range(nt)], axis=1)
    tiles = tiles.reshape(N, nt, cin1, p_in)                                # halo re-padded per tile
    tiles = jnp.pad(tiles, ((0, 0), (0, 0), (0, 0), (0, p_pad - p_in)))

    # ---- conv2-input zero-padding mask, one row per tile ----
    r = jnp.arange(th + 4)
    c = jnp.arange(wp)
    col_ok = (c >= 1) & (c <= W)
    masks = []
    for t in range(nt):
        y0 = t * th
        row_ok = (y0 + r >= 1) & (y0 + r <= H)
        masks.append((row_ok[:, None] & col_ok[None, :]).reshape(1, p_in))
    mask = jnp.stack(masks, axis=0).astype(jnp.float32)                     # [NT, 1, P_in]
    mask = jnp.pad(mask, ((0, 0), (0, 0), (0, p_pad - p_in)))

    # ---- weights: [cout, cin, 3, 3] -> [cout, 9*cin_pad], tap-major, bf16 for the MXU ----
    def fold(w, cin_pad):
        co, ci = w.shape[0], w.shape[1]
        wf = jnp.pad(w, ((0, 0), (0, cin_pad - ci), (0, 0), (0, 0)))
        return jnp.transpose(wf, (0, 2, 3, 1)).reshape(co, 9 * cin_pad)

    w1_mat = jnp.pad(fold(w1, cin1), ((0, cmid - C), (0, 0))).astype(jnp.bfloat16)
    w2_mat = fold(w2, cmid).astype(jnp.bfloat16)
    b1_col = jnp.pad(b1.reshape(C, 1), ((0, cmid - C), (0, 0))).astype(jnp.float32)
    b2_col = b2.reshape(C, 1).astype(jnp.float32)

    grid_spec = pltpu.PrefetchScalarGridSpec(
        num_scalar_prefetch=0,
        grid=(N, nt),
        in_specs=[
            pl.BlockSpec((pl.Squeezed(), pl.Squeezed(), cin1, p_pad),
                         lambda n, t: (n, t, 0, 0)),
            pl.BlockSpec((pl.Squeezed(), 1, p_pad), lambda n, t: (t, 0, 0)),
            pl.BlockSpec((cmid, 9 * cin1), lambda n, t: (0, 0)),
            pl.BlockSpec((cmid, 1), lambda n, t: (0, 0)),
            pl.BlockSpec((C, 9 * cmid), lambda n, t: (0, 0)),
            pl.BlockSpec((C, 1), lambda n, t: (0, 0)),
        ],
        out_specs=pl.BlockSpec((pl.Squeezed(), pl.Squeezed(), C, th * wp),
                               lambda n, t: (n, t, 0, 0)),
    )

    out = pl.pallas_call(
        functools.partial(_concat_fusion_kernel, wp=wp, th=th),
        out_shape=jax.ShapeDtypeStruct((N, nt, C, th * wp), jnp.float32),
        grid_spec=grid_spec,
        compiler_params=pltpu.CompilerParams(
            dimension_semantics=("parallel", "parallel")),
    )(tiles, mask, w1_mat, b1_col, w2_mat, b2_col)

    # [N, NT, C, TH, Wp] -> strip the 4 junk columns per row -> NCHW.
    out = out.reshape(N, nt, C, th, wp)[..., :W]
    out = jnp.transpose(out, (0, 2, 1, 3, 4)).reshape(N, C, H, W)
    return out


def _reference_forward(m1, m2, params):
    """Pure-JAX f32 reference (matches PyTorch semantics), NCHW."""
    w1, b1, w2, b2 = params["w1"], params["b1"], params["w2"], params["b2"]
    x = jnp.concatenate([m1, m2], axis=1)
    y = jax.lax.conv_general_dilated(
        x, w1, window_strides=(1, 1), padding="SAME",
        dimension_numbers=("NCHW", "OIHW", "NCHW")) + b1[None, :, None, None]
    y = _hardswish(y)
    y = jax.lax.conv_general_dilated(
        y, w2, window_strides=(1, 1), padding="SAME",
        dimension_numbers=("NCHW", "OIHW", "NCHW")) + b2[None, :, None, None]
    return y


def _init_params(key, feature_dim):
    C = feature_dim
    k1, k2, k3, k4 = jax.random.split(key, 4)
    return {
        "w1": 0.1 * jax.random.normal(k1, (C, 2 * C, 3, 3), jnp.float32),
        "b1": 0.1 * jax.random.normal(k2, (C,), jnp.float32),
        "w2": 0.1 * jax.random.normal(k3, (C, C, 3, 3), jnp.float32),
        "b2": 0.1 * jax.random.normal(k4, (C,), jnp.float32),
    }


if __name__ == "__main__":
    key = jax.random.PRNGKey(0)
    kp, k1, k2 = jax.random.split(key, 3)

    N, C, H, W = 2, 4, 16, 16            # feature_dim = 4
    params = _init_params(kp, C)
    m1 = jax.random.normal(k1, (N, C, H, W), jnp.float32)
    m2 = jax.random.normal(k2, (N, C, H, W), jnp.float32)

    out = jax.block_until_ready(concat_fusion_forward(m1, m2, params))
    ref = jax.block_until_ready(_reference_forward(m1, m2, params))

    assert out.shape == (N, C, H, W), out.shape
    # bf16 MXU inputs with f32 accumulation -> tolerance loosened vs the pure-f32 reference.
    max_err = float(jnp.max(jnp.abs(out - ref)))
    assert jnp.allclose(out, ref, atol=3e-2, rtol=3e-2), max_err

    print("KERNEL_OK")
</pallas_src>

<mosaic_0001>
module attributes {stable_mosaic.version = 11 : i64} {
  func.func @_concat_fusion_kernel(%arg0: i32, %arg1: i32, %arg2: memref<1x1x8x256xf32, #tpu.memory_space<vmem>>, %arg3: memref<1x1x256xf32, #tpu.memory_space<vmem>>, %arg4: memref<8x72xbf16, #tpu.memory_space<vmem>>, %arg5: memref<8x1xf32, #tpu.memory_space<vmem>>, %arg6: memref<4x72xbf16, #tpu.memory_space<vmem>>, %arg7: memref<4x1xf32, #tpu.memory_space<vmem>>, %arg8: memref<1x1x4x160xf32, #tpu.memory_space<vmem>>) attributes {dimension_semantics = [#tpu.dimension_semantics<parallel>, #tpu.dimension_semantics<parallel>], iteration_bounds = array<i64: 2, 2>, scalar_prefetch = 0 : i64, scratch_operands = 0 : i64, tpu.core_type = #tpu.core_type<tc>, window_params = [{transform_indices = @transform_0, window_bounds = array<i64: 1, 1, 8, 256>}, {transform_indices = @transform_1, window_bounds = array<i64: 1, 1, 256>}, {pipeline_mode = #tpu.pipeline_mode<synchronous>, transform_indices = @transform_2, window_bounds = array<i64: 8, 72>}, {pipeline_mode = #tpu.pipeline_mode<synchronous>, transform_indices = @transform_3, window_bounds = array<i64: 8, 1>}, {pipeline_mode = #tpu.pipeline_mode<synchronous>, transform_indices = @transform_4, window_bounds = array<i64: 4, 72>}, {pipeline_mode = #tpu.pipeline_mode<synchronous>, transform_indices = @transform_5, window_bounds = array<i64: 4, 1>}, {transform_indices = @transform_6, window_bounds = array<i64: 1, 1, 4, 160>}]} {
    %c0 = arith.constant 0 : index
    %c0_0 = arith.constant 0 : index
    %c0_1 = arith.constant 0 : index
    %c0_2 = arith.constant 0 : index
    %0 = vector.load %arg2[%c0, %c0_0, %c0_1, %c0_2] : memref<1x1x8x256xf32, #tpu.memory_space<vmem>>, vector<1x1x8x256xf32>
    %1 = vector.shape_cast %0 : vector<1x1x8x256xf32> to vector<8x256xf32>
    %c255_i32 = arith.constant 255 : i32
    %2 = tpu.dynamic_rotate %1 by %c255_i32 dim 1 : vector<8x256xf32>, i32 -> vector<8x256xf32>
    %c254_i32 = arith.constant 254 : i32
    %3 = tpu.dynamic_rotate %1 by %c254_i32 dim 1 : vector<8x256xf32>, i32 -> vector<8x256xf32>
    %c236_i32 = arith.constant 236 : i32
    %4 = tpu.dynamic_rotate %1 by %c236_i32 dim 1 : vector<8x256xf32>, i32 -> vector<8x256xf32>
    %c235_i32 = arith.constant 235 : i32
    %5 = tpu.dynamic_rotate %1 by %c235_i32 dim 1 : vector<8x256xf32>, i32 -> vector<8x256xf32>
    %c234_i32 = arith.constant 234 : i32
    %6 = tpu.dynamic_rotate %1 by %c234_i32 dim 1 : vector<8x256xf32>, i32 -> vector<8x256xf32>
    %c216_i32 = arith.constant 216 : i32
    %7 = tpu.dynamic_rotate %1 by %c216_i32 dim 1 : vector<8x256xf32>, i32 -> vector<8x256xf32>
    %c215_i32 = arith.constant 215 : i32
    %8 = tpu.dynamic_rotate %1 by %c215_i32 dim 1 : vector<8x256xf32>, i32 -> vector<8x256xf32>
    %c214_i32 = arith.constant 214 : i32
    %9 = tpu.dynamic_rotate %1 by %c214_i32 dim 1 : vector<8x256xf32>, i32 -> vector<8x256xf32>
    %10 = tpu.concatenate %1, %2, %3, %4, %5, %6, %7, %8, %9 in 0 : vector<8x256xf32>, vector<8x256xf32>, vector<8x256xf32>, vector<8x256xf32>, vector<8x256xf32>, vector<8x256xf32>, vector<8x256xf32>, vector<8x256xf32>, vector<8x256xf32> -> vector<72x256xf32>
    %11 = arith.truncf %10 : vector<72x256xf32> to vector<72x256xbf16>
    %c0_3 = arith.constant 0 : index
    %c0_4 = arith.constant 0 : index
    %12 = vector.load %arg4[%c0_3, %c0_4] : memref<8x72xbf16, #tpu.memory_space<vmem>>, vector<8x72xbf16>
    %cst = arith.constant dense<0.000000e+00> : vector<8x256xf32>
    %13 = tpu.matmul %12, %11, %cst {dimension_numbers = #tpu.dot_dimension_numbers<[1], [0], [0], [1], [0, 0, 1, 1], [], []>} : vector<8x72xbf16>, vector<72x256xbf16>, vector<8x256xf32> -> vector<8x256xf32>
    %c0_5 = arith.constant 0 : index
    %c0_6 = arith.constant 0 : index
    %14 = vector.load %arg5[%c0_5, %c0_6] : memref<8x1xf32, #tpu.memory_space<vmem>>, vector<8x1xf32>
    %15 = vector.broadcast %14 : vector<8x1xf32> to vector<8x256xf32>
    %16 = arith.addf %13, %15 : vector<8x256xf32>
    %cst_7 = arith.constant 3.000000e+00 : f32
    %17 = vector.broadcast %cst_7 : f32 to vector<8x256xf32>
    %18 = arith.addf %16, %17 : vector<8x256xf32>
    %cst_8 = arith.constant 0.000000e+00 : f32
    %cst_9 = arith.constant 6.000000e+00 : f32
    %19 = vector.broadcast %cst_8 : f32 to vector<8x256xf32>
    %20 = arith.maximumf %19, %18 : vector<8x256xf32>
    %21 = vector.broadcast %cst_9 : f32 to vector<8x256xf32>
    %22 = arith.minimumf %21, %20 : vector<8x256xf32>
    %23 = arith.mulf %16, %22 : vector<8x256xf32>
    %cst_10 = arith.constant 0.166666672 : f32
    %24 = vector.broadcast %cst_10 : f32 to vector<8x256xf32>
    %25 = arith.mulf %23, %24 : vector<8x256xf32>
    %c0_11 = arith.constant 0 : index
    %c0_12 = arith.constant 0 : index
    %c0_13 = arith.constant 0 : index
    %26 = vector.load %arg3[%c0_11, %c0_12, %c0_13] : memref<1x1x256xf32, #tpu.memory_space<vmem>>, vector<1x1x256xf32>
    %27 = vector.shape_cast %26 : vector<1x1x256xf32> to vector<1x256xf32>
    %28 = vector.broadcast %27 : vector<1x256xf32> to vector<8x256xf32>
    %29 = arith.mulf %25, %28 : vector<8x256xf32>
    %c255_i32_14 = arith.constant 255 : i32
    %30 = tpu.dynamic_rotate %29 by %c255_i32_14 dim 1 : vector<8x256xf32>, i32 -> vector<8x256xf32>
    %c254_i32_15 = arith.constant 254 : i32
    %31 = tpu.dynamic_rotate %29 by %c254_i32_15 dim 1 : vector<8x256xf32>, i32 -> vector<8x256xf32>
    %c236_i32_16 = arith.constant 236 : i32
    %32 = tpu.dynamic_rotate %29 by %c236_i32_16 dim 1 : vector<8x256xf32>, i32 -> vector<8x256xf32>
    %c235_i32_17 = arith.constant 235 : i32
    %33 = tpu.dynamic_rotate %29 by %c235_i32_17 dim 1 : vector<8x256xf32>, i32 -> vector<8x256xf32>
    %c234_i32_18 = arith.constant 234 : i32
    %34 = tpu.dynamic_rotate %29 by %c234_i32_18 dim 1 : vector<8x256xf32>, i32 -> vector<8x256xf32>
    %c216_i32_19 = arith.constant 216 : i32
    %35 = tpu.dynamic_rotate %29 by %c216_i32_19 dim 1 : vector<8x256xf32>, i32 -> vector<8x256xf32>
    %c215_i32_20 = arith.constant 215 : i32
    %36 = tpu.dynamic_rotate %29 by %c215_i32_20 dim 1 : vector<8x256xf32>, i32 -> vector<8x256xf32>
    %c214_i32_21 = arith.constant 214 : i32
    %37 = tpu.dynamic_rotate %29 by %c214_i32_21 dim 1 : vector<8x256xf32>, i32 -> vector<8x256xf32>
    %38 = tpu.concatenate %29, %30, %31, %32, %33, %34, %35, %36, %37 in 0 : vector<8x256xf32>, vector<8x256xf32>, vector<8x256xf32>, vector<8x256xf32>, vector<8x256xf32>, vector<8x256xf32>, vector<8x256xf32>, vector<8x256xf32>, vector<8x256xf32> -> vector<72x256xf32>
    %39 = arith.truncf %38 : vector<72x256xf32> to vector<72x256xbf16>
    %c0_22 = arith.constant 0 : index
    %c0_23 = arith.constant 0 : index
    %40 = vector.load %arg6[%c0_22, %c0_23] : memref<4x72xbf16, #tpu.memory_space<vmem>>, vector<4x72xbf16>
    %cst_24 = arith.constant dense<0.000000e+00> : vector<4x256xf32>
    %41 = tpu.matmul %40, %39, %cst_24 {dimension_numbers = #tpu.dot_dimension_numbers<[1], [0], [0], [1], [0, 0, 1, 1], [], []>} : vector<4x72xbf16>, vector<72x256xbf16>, vector<4x256xf32> -> vector<4x256xf32>
    %c0_25 = arith.constant 0 : index
    %c0_26 = arith.constant 0 : index
    %42 = vector.load %arg7[%c0_25, %c0_26] : memref<4x1xf32, #tpu.memory_space<vmem>>, vector<4x1xf32>
    %43 = vector.broadcast %42 : vector<4x1xf32> to vector<4x256xf32>
    %44 = arith.addf %41, %43 : vector<4x256xf32>
    %45 = vector.extract_strided_slice %44 {offsets = [0, 0], sizes = [4, 160], strides = [1, 1]} : vector<4x256xf32> to vector<4x160xf32>
    %c0_27 = arith.constant 0 : index
    %c0_28 = arith.constant 0 : index
    %c0_29 = arith.constant 0 : index
    %c0_30 = arith.constant 0 : index
    %46 = vector.load %arg8[%c0_27, %c0_28, %c0_29, %c0_30] : memref<1x1x4x160xf32, #tpu.memory_space<vmem>>, vector<1x1x4x160xf32>
    %47 = vector.shape_cast %46 : vector<1x1x4x160xf32> to vector<4x160xf32>
    %48 = vector.shape_cast %45 : vector<4x160xf32> to vector<1x1x4x160xf32>
    tpu.vector_store %arg8[%c0_27, %c0_28, %c0_29, %c0_30], %48 {strides = array<i32>} : memref<1x1x4x160xf32, #tpu.memory_space<vmem>>, vector<1x1x4x160xf32>,
    return
  }
  func.func @transform_0(%arg0: i32, %arg1: i32) -> (i32, i32, i32, i32) {
    %c0_i32 = arith.constant 0 : i32
    %c0_i32_0 = arith.constant 0 : i32
    %c0_i32_1 = arith.constant 0 : i32
    return %arg0, %arg1, %c0_i32, %c0_i32_0 : i32, i32, i32, i32
  }
  func.func @transform_1(%arg0: i32, %arg1: i32) -> (i32, i32, i32) {
    %c0_i32 = arith.constant 0 : i32
    %c0_i32_0 = arith.constant 0 : i32
    %c0_i32_1 = arith.constant 0 : i32
    return %arg1, %c0_i32, %c0_i32_0 : i32, i32, i32
  }
  func.func @transform_2(%arg0: i32, %arg1: i32) -> (i32, i32) {
    %c0_i32 = arith.constant 0 : i32
    %c0_i32_0 = arith.constant 0 : i32
    %c0_i32_1 = arith.constant 0 : i32
    return %c0_i32, %c0_i32_0 : i32, i32
  }
  func.func @transform_3(%arg0: i32, %arg1: i32) -> (i32, i32) {
    %c0_i32 = arith.constant 0 : i32
    %c0_i32_0 = arith.constant 0 : i32
    %c0_i32_1 = arith.constant 0 : i32
    return %c0_i32, %c0_i32_0 : i32, i32
  }
  func.func @transform_4(%arg0: i32, %arg1: i32) -> (i32, i32) {
    %c0_i32 = arith.constant 0 : i32
    %c0_i32_0 = arith.constant 0 : i32
    %c0_i32_1 = arith.constant 0 : i32
    return %c0_i32, %c0_i32_0 : i32, i32
  }
  func.func @transform_5(%arg0: i32, %arg1: i32) -> (i32, i32) {
    %c0_i32 = arith.constant 0 : i32
    %c0_i32_0 = arith.constant 0 : i32
    %c0_i32_1 = arith.constant 0 : i32
    return %c0_i32, %c0_i32_0 : i32, i32
  }
  func.func @transform_6(%arg0: i32, %arg1: i32) -> (i32, i32, i32, i32) {
    %c0_i32 = arith.constant 0 : i32
    %c0_i32_0 = arith.constant 0 : i32
    %c0_i32_1 = arith.constant 0 : i32
    return %arg0, %arg1, %c0_i32, %c0_i32_0 : i32, i32, i32, i32
  }
}

</mosaic_0001>

<llo_original>
// kernel: tpu_custom_call.1
$region0: #{tpu_custom_call.1}
  #allocation0 [shape = 'u32[]', space=smem, size = 0x4, offset = 0x4, fixed_abs, tag = 'smem constant byte address 0x4 - core index']
  #allocation1 [shape = 'u32[144,128]{1,0:T(1,128)}', space=vmem, size = 0x12000, scoped, tag = 'internal scratch']
  %s0 = inlined_call_operand.hbm [shape: f32[2,2,8,256], index: 0, kind: input, shape index: {}]
  %s1 = inlined_call_operand.vmem [shape: f32[2,1,256], index: 1, kind: input, shape index: {}]
  %s2 = inlined_call_operand.vmem [shape: bf16[8,72], index: 2, kind: input, shape index: {}]
  %s3 = inlined_call_operand.vmem [shape: f32[8,1], index: 3, kind: input, shape index: {}]
  %s4 = inlined_call_operand.vmem [shape: bf16[4,72], index: 4, kind: input, shape index: {}]
  %s5 = inlined_call_operand.vmem [shape: f32[4,1], index: 5, kind: input, shape index: {}]
  %s6 = inlined_call_operand.hbm [shape: f32[2,2,4,160], index: 6, kind: output, shape index: {}]
  %s7 = sld [smem:[#allocation0]]
  $region61: #{tpu_custom_call.1} parent=0
    _
  %s9 = ssub.s32 1, %s7
  %s10 = scalar_select 0, %s9, %s7
  $region1: #{tpu_custom_call.1} parent=0
    #allocation2 [shape = 'u8[16384]{0}', space=vmem, size = 0x4000, scoped, tag = 'input window, operand 0']
    #allocation3 [shape = 's32[2]{0}', space=sflag, size = 0x8, scoped, tag = 'scoped memory for tpu_custom_call.1']
    #allocation4 [shape = 's32[2]{0}', space=sflag, size = 0x8, scoped, tag = 'scoped memory for tpu_custom_call.1']
    #allocation5 [shape = 'u8[8192]{0}', space=vmem, size = 0x2000, scoped, tag = 'output window, operand 0']
    %11 = vsyncpa [#allocation3], 0
    %s12 = scalar_lea.sflag [#allocation3], 1
    %13 = vsyncpa %s12, 0
    %14 = vsyncpa [#allocation4], 0
    %s15 = scalar_lea.sflag [#allocation4], 1
    %16 = vsyncpa %s15, 0
    loop: start=0, step=1, limit=6
    $region2: #{tpu_custom_call.1} parent=1 // loop_pre_header
      _
    $region3: #{tpu_custom_call.1} parent=1 // loop_header
      %s18 = sphi 0, %s22
      %p19 = scmp.ge.s32.totalorder %s18, 6
      %s25 = sphi 0, %s37
      %s26 = sphi 0, %s33
      %s27 = sphi 0, %s25
      %s28 = sphi 0, %s26
      %s29 = sphi 0, %s27
      %s30 = sphi 0, %s28
      %s42 = sphi 0, %s44
      %s45 = sphi 0, %s42
      %s46 = sphi 0, %s45
      %s62 = sphi 0, %s46
      %s68 = sphi 0, %s70
      %s71 = sphi 0, %s68
      %s72 = sphi 0, %s71
      %s88 = sphi 0, %s72
      %s92 = sphi 0, %s92
      %s94 = sphi 0, %s92
      %s95 = sphi 0, %s94
      %s109 = sphi 0, %s95
      %s113 = sphi 0, %s113
      %s115 = sphi 0, %s113
      %s116 = sphi 0, %s115
      %s130 = sphi 0, %s116
      %s134 = sphi 0, %s134
      %s136 = sphi 0, %s134
      %s137 = sphi 0, %s136
      %s151 = sphi 0, %s137
      %s155 = sphi 0, %s155
      %s157 = sphi 0, %s155
      %s158 = sphi 0, %s157
      %s172 = sphi 0, %s158
      %s180 = sphi 0, %s182
      %s183 = sphi 0, %s180
      %s184 = sphi 0, %s183
      %s200 = sphi 0, %s184
    $region4: #{tpu_custom_call.1} parent=1 // loop_header_branch
      %21 = sbr.rel (%p19) target = $region8
    $region5: #{tpu_custom_call.1} parent=1 // loop_body
      %s23 = ssub.s32 %s18, 1
      %s24 = ssub.s32 %s18, 2
      %s31 = sadd.s32 1, %s26
      %p32 = scmp.ge.s32.totalorder %s31, 2
      %s33 = scalar_select %p32, 0, %s31
      %s34 = sadd.s32 1, %s25
      %s35 = scalar_select %p32, %s34, %s25
      %p36 = scmp.ge.s32.totalorder %s35, 2
      %s37 = scalar_select %p36, 0, %s35
      %s38 = ssub.s32 %s25, %s37
      %s39 = ssub.s32 %s26, %s33
      %s40 = sor.u32 %s38, %s39
      %p41 = scmp.eq.s32.totalorder %s40, 0
      %s43 = sadd.s32 %s42, 1
      %s44 = scalar_select %p41, %s42, %s43
      %p47 = pneg %p41
      %p48 = scmp.eq.s32.totalorder %s18, 3
      %p49 = por %p47, %p48
      %p50 = scmp.ne.s32.totalorder %s42, %s45
      %p51 = scmp.eq.s32.totalorder %s18, 0
      %p52 = por %p50, %p51
      %p53 = scmp.ne.s32.totalorder %s42, %s45
      %p54 = scmp.eq.s32.totalorder %s23, 3
      %p55 = por %p53, %p54
      %p56 = scmp.ne.s32.totalorder %s45, %s46
      %p57 = scmp.eq.s32.totalorder %s23, 0
      %p58 = por %p56, %p57
      %p59 = scmp.ne.s32.totalorder %s45, %s46
      %p60 = scmp.eq.s32.totalorder %s24, 3
      %p61 = por %p59, %p60
      %p63 = scmp.ne.s32.totalorder %s46, %s62
      %p64 = scmp.eq.s32.totalorder %s24, 0
      %p65 = por %p63, %p64
      %s66 = ssub.s32 %s26, %s33
      %p67 = scmp.eq.s32.totalorder %s66, 0
      %s69 = sadd.s32 %s68, 1
      %s70 = scalar_select %p67, %s68, %s69
      %p73 = pneg %p67
      %p74 = scmp.eq.s32.totalorder %s18, 3
      %p75 = por %p73, %p74
      %p76 = scmp.ne.s32.totalorder %s68, %s71
      %p77 = scmp.eq.s32.totalorder %s18, 0
      %p78 = por %p76, %p77
      %p79 = scmp.ne.s32.totalorder %s68, %s71
      %p80 = scmp.eq.s32.totalorder %s23, 3
      %p81 = por %p79, %p80
      %p82 = scmp.ne.s32.totalorder %s71, %s72
      %p83 = scmp.eq.s32.totalorder %s23, 0
      %p84 = por %p82, %p83
      %p85 = scmp.ne.s32.totalorder %s71, %s72
      %p86 = scmp.eq.s32.totalorder %s24, 3
      %p87 = por %p85, %p86
      %p89 = scmp.ne.s32.totalorder %s72, %s88
      %p90 = scmp.eq.s32.totalorder %s24, 0
      %p91 = por %p89, %p90
      %s93 = sadd.s32 %s92, 1
      %p96 = scmp.eq.s32.totalorder %s18, 3
      %p97 = scmp.ne.s32.totalorder %s92, %s94
      %p98 = scmp.eq.s32.totalorder %s18, 0
      %p99 = por %p97, %p98
      %p100 = scmp.ne.s32.totalorder %s92, %s94
      %p101 = scmp.eq.s32.totalorder %s23, 3
      %p102 = por %p100, %p101
      %p103 = scmp.ne.s32.totalorder %s94, %s95
      %p104 = scmp.eq.s32.totalorder %s23, 0
      %p105 = por %p103, %p104
      %p106 = scmp.ne.s32.totalorder %s94, %s95
      %p107 = scmp.eq.s32.totalorder %s24, 3
      %p108 = por %p106, %p107
      %p110 = scmp.ne.s32.totalorder %s95, %s109
      %p111 = scmp.eq.s32.totalorder %s24, 0
      %p112 = por %p110, %p111
      %s114 = sadd.s32 %s113, 1
      %p117 = scmp.eq.s32.totalorder %s18, 3
      %p118 = scmp.ne.s32.totalorder %s113, %s115
      %p119 = scmp.eq.s32.totalorder %s18, 0
      %p120 = por %p118, %p119
      %p121 = scmp.ne.s32.totalorder %s113, %s115
      %p122 = scmp.eq.s32.totalorder %s23, 3
      %p123 = por %p121, %p122
      %p124 = scmp.ne.s32.totalorder %s115, %s116
      %p125 = scmp.eq.s32.totalorder %s23, 0
      %p126 = por %p124, %p125
      %p127 = scmp.ne.s32.totalorder %s115, %s116
      %p128 = scmp.eq.s32.totalorder %s24, 3
      %p129 = por %p127, %p128
      %p131 = scmp.ne.s32.totalorder %s116, %s130
      %p132 = scmp.eq.s32.totalorder %s24, 0
      %p133 = por %p131, %p132
      %s135 = sadd.s32 %s134, 1
      %p138 = scmp.eq.s32.totalorder %s18, 3
      %p139 = scmp.ne.s32.totalorder %s134, %s136
      %p140 = scmp.eq.s32.totalorder %s18, 0
      %p141 = por %p139, %p140
      %p142 = scmp.ne.s32.totalorder %s134, %s136
      %p143 = scmp.eq.s32.totalorder %s23, 3
      %p144 = por %p142, %p143
      %p145 = scmp.ne.s32.totalorder %s136, %s137
      %p146 = scmp.eq.s32.totalorder %s23, 0
      %p147 = por %p145, %p146
      %p148 = scmp.ne.s32.totalorder %s136, %s137
      %p149 = scmp.eq.s32.totalorder %s24, 3
      %p150 = por %p148, %p149
      %p152 = scmp.ne.s32.totalorder %s137, %s151
      %p153 = scmp.eq.s32.totalorder %s24, 0
      %p154 = por %p152, %p153
      %s156 = sadd.s32 %s155, 1
      %p159 = scmp.eq.s32.totalorder %s18, 3
      %p160 = scmp.ne.s32.totalorder %s155, %s157
      %p161 = scmp.eq.s32.totalorder %s18, 0
      %p162 = por %p160, %p161
      %p163 = scmp.ne.s32.totalorder %s155, %s157
      %p164 = scmp.eq.s32.totalorder %s23, 3
      %p165 = por %p163, %p164
      %p166 = scmp.ne.s32.totalorder %s157, %s158
      %p167 = scmp.eq.s32.totalorder %s23, 0
      %p168 = por %p166, %p167
      %p169 = scmp.ne.s32.totalorder %s157, %s158
      %p170 = scmp.eq.s32.totalorder %s24, 3
      %p171 = por %p169, %p170
      %p173 = scmp.ne.s32.totalorder %s158, %s172
      %p174 = scmp.eq.s32.totalorder %s24, 0
      %p175 = por %p173, %p174
      %s176 = ssub.s32 %s25, %s37
      %s177 = ssub.s32 %s26, %s33
      %s178 = sor.u32 %s176, %s177
      %p179 = scmp.eq.s32.totalorder %s178, 0
      %s181 = sadd.s32 %s180, 1
      %s182 = scalar_select %p179, %s180, %s181
      %p185 = pneg %p179
      %p186 = scmp.eq.s32.totalorder %s18, 3
      %p187 = por %p185, %p186
      %p188 = scmp.ne.s32.totalorder %s180, %s183
      %p189 = scmp.eq.s32.totalorder %s18, 0
      %p190 = por %p188, %p189
      %p191 = scmp.ne.s32.totalorder %s180, %s183
      %p192 = scmp.eq.s32.totalorder %s23, 3
      %p193 = por %p191, %p192
      %p194 = scmp.ne.s32.totalorder %s183, %s184
      %p195 = scmp.eq.s32.totalorder %s23, 0
      %p196 = por %p194, %p195
      %p197 = scmp.ne.s32.totalorder %s183, %s184
      %p198 = scmp.eq.s32.totalorder %s24, 3
      %p199 = por %p197, %p198
      %p201 = scmp.ne.s32.totalorder %s184, %s200
      %p202 = scmp.eq.s32.totalorder %s24, 0
      %p203 = por %p201, %p202
      %p204 = scmp.le.s32.totalorder 1, %s18
      %p205 = scmp.lt.s32.totalorder %s18, 5
      %p206 = pnand %p204, %p205
      %p207 = pneg %p206
      // Predicated region
      $region9: #{tpu_custom_call.1} parent=5 // pred_check
        _
      $region10: #{tpu_custom_call.1} parent=5 // pred_check_branch
        %209 = sbr.rel (%p206) target = $region12
      $region11: #{tpu_custom_call.1} parent=5 // pred_region
        %s210 = ssub.s32 %s18, 1
        // Predicated region
        $region13: #{tpu_custom_call.1} parent=11 // pred_check
          %p211 = pneg %p105
        $region14: #{tpu_custom_call.1} parent=11 // pred_check_branch
          %213 = sbr.rel (%p211) target = $region16
        $region15: #{tpu_custom_call.1} parent=11 // pred_region
          _
        $region16: #{tpu_custom_call.1} parent=11 // pred_fallthru
          _
        // Predicated region
        $region17: #{tpu_custom_call.1} parent=11 // pred_check
          %p214 = pneg %p126
        $region18: #{tpu_custom_call.1} parent=11 // pred_check_branch
          %216 = sbr.rel (%p214) target = $region20
        $region19: #{tpu_custom_call.1} parent=11 // pred_region
          _
        $region20: #{tpu_custom_call.1} parent=11 // pred_fallthru
          _
        // Predicated region
        $region21: #{tpu_custom_call.1} parent=11 // pred_check
          %p217 = pneg %p147
        $region22: #{tpu_custom_call.1} parent=11 // pred_check_branch
          %219 = sbr.rel (%p217) target = $region24
        $region23: #{tpu_custom_call.1} parent=11 // pred_region
          _
        $region24: #{tpu_custom_call.1} parent=11 // pred_fallthru
          _
        // Predicated region
        $region25: #{tpu_custom_call.1} parent=11 // pred_check
          %p220 = pneg %p168
        $region26: #{tpu_custom_call.1} parent=11 // pred_check_branch
          %222 = sbr.rel (%p220) target = $region28
        $region27: #{tpu_custom_call.1} parent=11 // pred_region
          _
        $region28: #{tpu_custom_call.1} parent=11 // pred_fallthru
          _
      $region12: #{tpu_custom_call.1} parent=5 // pred_fallthru
        _
      %p223 = scmp.lt.s32.totalorder %s18, 4
      // Predicated region
      $region29: #{tpu_custom_call.1} parent=5 // pred_check
        %p224 = pneg %p223
      $region30: #{tpu_custom_call.1} parent=5 // pred_check_branch
        %226 = sbr.rel (%p224) target = $region32
      $region31: #{tpu_custom_call.1} parent=5 // pred_region
        // Predicated region
        $region33: #{tpu_custom_call.1} parent=31 // pred_check
          %p227 = pneg %p52
        $region34: #{tpu_custom_call.1} parent=31 // pred_check_branch
          %229 = sbr.rel (%p227) target = $region36
        $region35: #{tpu_custom_call.1} parent=31 // pred_region
          %s230 = sand.u32 %s42, 1
          %s231 = scalar_lea.sflag [#allocation3], %s230
          %s232 = sand.u32 %s42, 1
          %s233 = smul.addr %s232, 16
          %s234 = scalar_lea.vmem [#allocation2], %s233
          %s236 = ssub.s32 256, 256
          %237 = vsyncadd %s231, %s236
          %s238 = smul.addr %s26, 2
          %s239 = smul.addr %s25, 4
          %s240 = sadd.s32 %s238, %s239
          %s241 = smul.addr %s240, 128
          %s242 = scalar_lea.hbm %s0, %s241
          %s244 = sshll.u32 %s234, 4
          %s245 = int_to_ptr.vmem [resolvable:$true] %s244
          %247 = dma.hbm_to_vmem [thread:$0]  %s242, 256, %s245, %s231
        $region36: #{tpu_custom_call.1} parent=31 // pred_fallthru
          _
        // Predicated region
        $region37: #{tpu_custom_call.1} parent=31 // pred_check
          %p248 = pneg %p78
        $region38: #{tpu_custom_call.1} parent=31 // pred_check_branch
          %250 = sbr.rel (%p248) target = $region40
        $region39: #{tpu_custom_call.1} parent=31 // pred_region
          %p251 = scmp.lt.s32.totalorder %s26, 1
          %s252 = scalar_select %p251, %s26, 1
          %s253 = smul.addr %s252, 2
          %s254 = scalar_lea.vmem %s1, %s253
        $region40: #{tpu_custom_call.1} parent=31 // pred_fallthru
          _
      $region32: #{tpu_custom_call.1} parent=5 // pred_fallthru
        _
      %p255 = scmp.le.s32.totalorder 1, %s18
      %p256 = scmp.lt.s32.totalorder %s18, 5
      %p257 = pnand %p255, %p256
      %p258 = pneg %p257
      // Predicated region
      $region41: #{tpu_custom_call.1} parent=5 // pred_check
        _
      $region42: #{tpu_custom_call.1} parent=5 // pred_check_branch
        %260 = sbr.rel (%p257) target = $region44
      $region43: #{tpu_custom_call.1} parent=5 // pred_region
        %s261 = ssub.s32 %s18, 1
        %s262 = sand.u32 %s45, 1
        %s263 = scalar_lea.sflag [#allocation3], %s262
        %s264 = sand.u32 %s45, 1
        %s265 = smul.addr %s264, 16
        %s266 = scalar_lea.vmem [#allocation2], %s265
        // Predicated region
        $region45: #{tpu_custom_call.1} parent=43 // pred_check
          %p267 = pneg %p58
        $region46: #{tpu_custom_call.1} parent=43 // pred_check_branch
          %269 = sbr.rel (%p267) target = $region48
        $region47: #{tpu_custom_call.1} parent=43 // pred_region
          %270 = dma.done %s263, 256
        $region48: #{tpu_custom_call.1} parent=43 // pred_fallthru
          _
        %s271 = sand.u32 %s45, 1
        %s272 = scalar_lea.sflag [#allocation3], %s271
        %s273 = sand.u32 %s45, 1
        %s274 = smul.addr %s273, 16
        %s275 = scalar_lea.vmem [#allocation2], %s274
        %p276 = pneg %p58
        %p277 = pneg %p55
        %p278 = scmp.lt.s32.totalorder %s28, 1
        %s279 = scalar_select %p278, %s28, 1
        %s280 = smul.addr %s279, 2
        %s281 = scalar_lea.vmem %s1, %s280
        %p282 = pneg %p84
        %p283 = pneg %p81
        %p284 = pneg %p105
        %p285 = pneg %p102
        %p286 = pneg %p126
        %p287 = pneg %p123
        %p288 = pneg %p147
        %p289 = pneg %p144
        %p290 = pneg %p168
        %p291 = pneg %p165
        %p292 = pneg %p196
        %p293 = pneg %p193
        %s294 = sand.u32 %s183, 1
        %s295 = scalar_lea.sflag [#allocation4], %s294
        %s296 = sand.u32 %s183, 1
        %s297 = smul.addr %s296, 8
        %s298 = scalar_lea.vmem [#allocation5], %s297
        %p299 = scmp.lt.s32.totalorder %s28, 1
        %s300 = scalar_select %p299, %s28, 1
        %s301 = smul.addr %s300, 2
        %s302 = scalar_lea.vmem %s1, %s301
        %v304 = vld [vmem:[%s266] sm:$0xff]
        %v305 = vld [vmem:[%s266 + $0x8] sm:$0xff]
        %306 = vrot.lane.b32.xlu0 %v304, 127
        %v307 = vpop.permute.xlu0 %306
        %308 = vrot.lane.b32.xlu0 %v305, 127
        %v309 = vpop.permute.xlu0 %308
        %v310 = vlaneseq
        %v311 = vand.u32 %v310, 127
        %vm312 = vcmp.lt.s32.totalorder %v311, 127
        %v313 = vsel %vm312, %v307, %v309
        %v314 = vsel %vm312, %v309, %v307
        %315 = vrot.lane.b32.xlu0 %v304, 126
        %v316 = vpop.permute.xlu0 %315
        %317 = vrot.lane.b32.xlu0 %v305, 126
        %v318 = vpop.permute.xlu0 %317
        %vm319 = vcmp.lt.s32.totalorder %v311, 126
        %v320 = vsel %vm319, %v316, %v318
        %v321 = vsel %vm319, %v318, %v316
        %322 = vrot.lane.b32.xlu0 %v304, 108
        %v323 = vpop.permute.xlu0 %322
        %324 = vrot.lane.b32.xlu0 %v305, 108
        %v325 = vpop.permute.xlu0 %324
        %vm326 = vcmp.lt.s32.totalorder %v311, 108
        %v327 = vsel %vm326, %v323, %v325
        %v328 = vsel %vm326, %v325, %v323
        %329 = vrot.lane.b32.xlu0 %v304, 107
        %v330 = vpop.permute.xlu0 %329
        %331 = vrot.lane.b32.xlu0 %v305, 107
        %v332 = vpop.permute.xlu0 %331
        %vm333 = vcmp.lt.s32.totalorder %v311, 107
        %v334 = vsel %vm333, %v330, %v332
        %v335 = vsel %vm333, %v332, %v330
        %336 = vrot.lane.b32.xlu0 %v304, 106
        %v337 = vpop.permute.xlu0 %336
        %338 = vrot.lane.b32.xlu0 %v305, 106
        %v339 = vpop.permute.xlu0 %338
        %vm340 = vcmp.lt.s32.totalorder %v311, 106
        %v341 = vsel %vm340, %v337, %v339
        %v342 = vsel %vm340, %v339, %v337
        %343 = vrot.lane.b32.xlu0 %v304, 88
        %v344 = vpop.permute.xlu0 %343
        %345 = vrot.lane.b32.xlu0 %v305, 88
        %v346 = vpop.permute.xlu0 %345
        %vm347 = vcmp.lt.s32.totalorder %v311, 88
        %v348 = vsel %vm347, %v344, %v346
        %v349 = vsel %vm347, %v346, %v344
        %350 = vrot.lane.b32.xlu0 %v304, 87
        %v351 = vpop.permute.xlu0 %350
        %352 = vrot.lane.b32.xlu0 %v305, 87
        %v353 = vpop.permute.xlu0 %352
        %vm354 = vcmp.lt.s32.totalorder %v311, 87
        %v355 = vsel %vm354, %v351, %v353
        %v356 = vsel %vm354, %v353, %v351
        %357 = vrot.lane.b32.xlu0 %v304, 86
        %v358 = vpop.permute.xlu0 %357
        %359 = vrot.lane.b32.xlu0 %v305, 86
        %v360 = vpop.permute.xlu0 %359
        %vm361 = vcmp.lt.s32.totalorder %v311, 86
        %v362 = vsel %vm361, %v358, %v360
        %v363 = vsel %vm361, %v360, %v358
        %v364 = vpack.c.bf16 %v313, %v304
        %v365 = vpack.c.bf16 %v314, %v305
        %v366 = vpack.c.bf16 %v327, %v320
        %v367 = vpack.c.bf16 %v328, %v321
        %v368 = vpack.c.bf16 %v341, %v334
        %v369 = vpack.c.bf16 %v342, %v335
        %v370 = vpack.c.bf16 %v355, %v348
        %v371 = vpack.c.bf16 %v356, %v349
        %v372 = vpack.c.bf16 %v362, %v362
        %v373 = vpack.c.bf16 %v363, %v363
        %v374 = vld [vmem:[%s2] sm:$0xf]
        %v375 = vld [vmem:[%s3] sm:$0xff]
        %377 = vset.pattern.permute.xlu0 0
        %378 = vperm.xlu0 %377, %v375
        %v379 = vpop.permute.xlu0 %378
        %vm381 = vcmask 588800
        %v383 = vsel %vm381, %v374, 0
        %vm385 = vcmask 1043456
        %v387 = vsel %vm385, %v372, 0
        %v390 = vsel %vm385, %v373, 0
        %392 = vmatprep.subr.bf16.mxu0 0
        %393 = vmatpush1.bf16.msra.mxu0 0
        %394 = vmatprep.subr.bf16.mxu0 0
        %395 = vmatpush1.bf16.msra.mxu0 0
        %396 = vmatprep.subr.bf16.mxu0 0
        %397 = vmatpush1.bf16.msra.mxu0 0
        %398 = vmatprep.subr.bf16.mxu0 %v390
        %399 = vmatpush1.bf16.msra.mxu0 %v387
        %400 = vmatprep.subr.bf16.mxu0 %v371
        %401 = vmatpush1.bf16.msra.mxu0 %v370
        %402 = vmatprep.subr.bf16.mxu0 %v369
        %403 = vmatpush1.bf16.msra.mxu0 %v368
        %404 = vmatprep.subr.bf16.mxu0 %v367
        %405 = vmatpush1.bf16.msra.mxu0 %v366
        %406 = vmatprep.subr.bf16.mxu0 %v365
        %407 = vmatpush1.bf16.msra.mxu0 %v364
        %408 = vmatprep.subr.bf16.mxu0 0
        %409 = vmatpush2.bf16.msra.mxu0 0
        %410 = vmatprep.subr.bf16.mxu0 0
        %411 = vmatpush2.bf16.msra.mxu0 0
        %412 = vmatprep.subr.bf16.mxu0 0
        %413 = vmatpush2.bf16.msra.mxu0 0
        %414 = vmatprep.subr.bf16.mxu0 0
        %415 = vmatpush2.bf16.msra.mxu0 0
        %416 = vmatprep.subr.bf16.mxu0 0
        %417 = vmatpush2.bf16.msra.mxu0 0
        %418 = vmatprep.subr.bf16.mxu0 0
        %419 = vmatpush2.bf16.msra.mxu0 0
        %420 = vmatprep.subr.bf16.mxu0 0
        %421 = vmatpush2.bf16.msra.mxu0 0
        %422 = vmatprep.subr.bf16.mxu0 0
        %423 = vmatpush2.bf16.msra.mxu0 0
        %424 = vmatprep.mubr.bf16.mxu0 0
        %425 = vmatmul.mubr.bf16.gmra.mxu0 %v383
        %v426 = vpop.f32.mrf.mxu0
        %v427 = vadd.f32 %v379, %v426
        %v428 = vpop.f32.mrf.mxu0
        %v429 = vadd.f32 %v379, %v428
        %v430 = vpop.f32.mrf.mxu0
        %v431 = vpop.f32.mrf.mxu0
        %432 = vdwg.mxu0
        %v433 = vadd.f32 %v427, 3.0
        %v434 = vadd.f32 %v429, 3.0
        %v435 = vmax.f32 %v433, 0.0
        %v436 = vmax.f32 %v434, 0.0
        %v437 = vmin.f32 %v435, 6.0
        %v438 = vmin.f32 %v436, 6.0
        %v439 = vmul.f32 %v427, %v437
        %v440 = vmul.f32 %v429, %v438
        %v441 = vmul.f32 %v439, 0.16666667
        %v442 = vmul.f32 %v440, 0.16666667
        %v443 = vld [vmem:[%s302] sm:$0x3]
        %v445 = vlaneseq
        %v446 = vshrl.u32 %v445, 7
        %v447 = vsub.s32 0, %v446
        %v448 = vrot.slane %v443, %v447
        %v449 = vlaneseq
        %v450 = vshrl.u32 %v449, 7
        %v451 = vsub.s32 1, %v450
        %v452 = vrot.slane %v443, %v451
        %v455 = vmul.f32 %v441, %v448
        %v456 = vmul.f32 %v442, %v452
        %457 = vrot.lane.b32.xlu0 %v455, 127
        %v458 = vpop.permute.xlu0 %457
        %459 = vrot.lane.b32.xlu0 %v456, 127
        %v460 = vpop.permute.xlu0 %459
        %v461 = vsel %vm312, %v458, %v460
        %v462 = vsel %vm312, %v460, %v458
        %463 = vrot.lane.b32.xlu0 %v455, 126
        %v464 = vpop.permute.xlu0 %463
        %465 = vrot.lane.b32.xlu0 %v456, 126
        %v466 = vpop.permute.xlu0 %465
        %v467 = vsel %vm319, %v464, %v466
        %v468 = vsel %vm319, %v466, %v464
        %469 = vrot.lane.b32.xlu0 %v455, 108
        %v470 = vpop.permute.xlu0 %469
        %471 = vrot.lane.b32.xlu0 %v456, 108
        %v472 = vpop.permute.xlu0 %471
        %v473 = vsel %vm326, %v470, %v472
        %v474 = vsel %vm326, %v472, %v470
        %475 = vrot.lane.b32.xlu0 %v455, 107
        %v476 = vpop.permute.xlu0 %475
        %477 = vrot.lane.b32.xlu0 %v456, 107
        %v478 = vpop.permute.xlu0 %477
        %v479 = vsel %vm333, %v476, %v478
        %v480 = vsel %vm333, %v478, %v476
        %481 = vrot.lane.b32.xlu0 %v455, 106
        %v482 = vpop.permute.xlu0 %481
        %483 = vrot.lane.b32.xlu0 %v456, 106
        %v484 = vpop.permute.xlu0 %483
        %v485 = vsel %vm340, %v482, %v484
        %v486 = vsel %vm340, %v484, %v482
        %487 = vrot.lane.b32.xlu0 %v455, 88
        %v488 = vpop.permute.xlu0 %487
        %489 = vrot.lane.b32.xlu0 %v456, 88
        %v490 = vpop.permute.xlu0 %489
        %v491 = vsel %vm347, %v488, %v490
        %v492 = vsel %vm347, %v490, %v488
        %493 = vrot.lane.b32.xlu0 %v455, 87
        %v494 = vpop.permute.xlu0 %493
        %495 = vrot.lane.b32.xlu0 %v456, 87
        %v496 = vpop.permute.xlu0 %495
        %v497 = vsel %vm354, %v494, %v496
        %v498 = vsel %vm354, %v496, %v494
        %499 = vrot.lane.b32.xlu0 %v455, 86
        %v500 = vpop.permute.xlu0 %499
        %501 = vrot.lane.b32.xlu0 %v456, 86
        %v502 = vpop.permute.xlu0 %501
        %v503 = vsel %vm361, %v500, %v502
        %v504 = vsel %vm361, %v502, %v500
        %v505 = vpack.c.bf16 %v461, %v455
        %v506 = vpack.c.bf16 %v462, %v456
        %v507 = vpack.c.bf16 %v473, %v467
        %v508 = vpack.c.bf16 %v474, %v468
        %v509 = vpack.c.bf16 %v485, %v479
        %v510 = vpack.c.bf16 %v486, %v480
        %v511 = vpack.c.bf16 %v497, %v491
        %v512 = vpack.c.bf16 %v498, %v492
        %v513 = vpack.c.bf16 %v503, %v503
        %v514 = vpack.c.bf16 %v504, %v504
        %v515 = vld [vmem:[%s4] sm:$0x3]
        %v516 = vld [vmem:[%s5] sm:$0xf]
        %518 = vset.pattern.permute.xlu0 0
        %519 = vperm.xlu0 %518, %v516
        %v520 = vpop.permute.xlu0 %519
        %v523 = vsel %vm381, %v515, 0
        %v526 = vsel %vm385, %v513, 0
        %v529 = vsel %vm385, %v514, 0
        %531 = vmatprep.subr.bf16.mxu0 0
        %532 = vmatpush1.bf16.msra.mxu0 0
        %533 = vmatprep.subr.bf16.mxu0 0
        %534 = vmatpush1.bf16.msra.mxu0 0
        %535 = vmatprep.subr.bf16.mxu0 0
        %536 = vmatpush1.bf16.msra.mxu0 0
        %537 = vmatprep.subr.bf16.mxu0 %v529
        %538 = vmatpush1.bf16.msra.mxu0 %v526
        %539 = vmatprep.subr.bf16.mxu0 %v512
        %540 = vmatpush1.bf16.msra.mxu0 %v511
        %541 = vmatprep.subr.bf16.mxu0 %v510
        %542 = vmatpush1.bf16.msra.mxu0 %v509
        %543 = vmatprep.subr.bf16.mxu0 %v508
        %544 = vmatpush1.bf16.msra.mxu0 %v507
        %545 = vmatprep.subr.bf16.mxu0 %v506
        %546 = vmatpush1.bf16.msra.mxu0 %v505
        %547 = vmatprep.subr.bf16.mxu0 0
        %548 = vmatpush2.bf16.msra.mxu0 0
        %549 = vmatprep.subr.bf16.mxu0 0
        %550 = vmatpush2.bf16.msra.mxu0 0
        %551 = vmatprep.subr.bf16.mxu0 0
        %552 = vmatpush2.bf16.msra.mxu0 0
        %553 = vmatprep.subr.bf16.mxu0 0
        %554 = vmatpush2.bf16.msra.mxu0 0
        %555 = vmatprep.subr.bf16.mxu0 0
        %556 = vmatpush2.bf16.msra.mxu0 0
        %557 = vmatprep.subr.bf16.mxu0 0
        %558 = vmatpush2.bf16.msra.mxu0 0
        %559 = vmatprep.subr.bf16.mxu0 0
        %560 = vmatpush2.bf16.msra.mxu0 0
        %561 = vmatprep.subr.bf16.mxu0 0
        %562 = vmatpush2.bf16.msra.mxu0 0
        %563 = vmatprep.mubr.bf16.mxu0 0
        %564 = vmatmul.mubr.bf16.gmra.mxu0 %v523
        %v565 = vpop.f32.mrf.mxu0
        %v566 = vadd.f32 %v520, %v565
        %v567 = vpop.f32.mrf.mxu0
        %v568 = vadd.f32 %v520, %v567
        %v569 = vpop.f32.mrf.mxu0
        %v570 = vpop.f32.mrf.mxu0
        %571 = vdwg.mxu0
        %v574 = vcombine.low %v566, %v568
        %vm576 = vcmask 261124
        %vm577 = vmor %vm576, %vm385
        %578 = vst.msk [vmem:[%s298] sm:$0xff] %vm577, %v574
        %s579 = sand.u32 %s183, 1
        %s580 = scalar_lea.sflag [#allocation4], %s579
        %s581 = sand.u32 %s183, 1
        %s582 = smul.addr %s581, 8
        %s583 = scalar_lea.vmem [#allocation5], %s582
        // Predicated region
        $region49: #{tpu_custom_call.1} parent=43 // pred_check
          %p584 = pneg %p193
        $region50: #{tpu_custom_call.1} parent=43 // pred_check_branch
          %586 = sbr.rel (%p584) target = $region52
        $region51: #{tpu_custom_call.1} parent=43 // pred_region
          %s588 = ssub.s32 128, 128
          %589 = vsyncadd %s580, %s588
          %s590 = smul.addr %s28, 2
          %s591 = smul.addr %s27, 4
          %s592 = sadd.s32 %s590, %s591
          %s593 = smul.addr %s592, 64
          %s594 = scalar_lea.hbm %s6, %s593
          %s596 = sshll.u32 %s583, 4
          %s597 = int_to_ptr.vmem [resolvable:$true] %s596
          %599 = dma.vmem_to_hbm [thread:$0]  %s597, 128, %s594, %s580
        $region52: #{tpu_custom_call.1} parent=43 // pred_fallthru
          _
      $region44: #{tpu_custom_call.1} parent=5 // pred_fallthru
        _
      %p600 = scmp.le.s32.totalorder 2, %s18
      // Predicated region
      $region53: #{tpu_custom_call.1} parent=5 // pred_check
        %p601 = pneg %p600
      $region54: #{tpu_custom_call.1} parent=5 // pred_check_branch
        %603 = sbr.rel (%p601) target = $region56
      $region55: #{tpu_custom_call.1} parent=5 // pred_region
        %s604 = ssub.s32 %s18, 2
        // Predicated region
        $region57: #{tpu_custom_call.1} parent=55 // pred_check
          %p605 = pneg %p199
        $region58: #{tpu_custom_call.1} parent=55 // pred_check_branch
          %607 = sbr.rel (%p605) target = $region60
        $region59: #{tpu_custom_call.1} parent=55 // pred_region
          %s608 = sand.u32 %s184, 1
          %s609 = scalar_lea.sflag [#allocation4], %s608
          %s610 = sand.u32 %s184, 1
          %s611 = smul.addr %s610, 8
          %s612 = scalar_lea.vmem [#allocation5], %s611
          %613 = dma.done %s609, 128
        $region60: #{tpu_custom_call.1} parent=55 // pred_fallthru
          _
      $region56: #{tpu_custom_call.1} parent=5 // pred_fallthru
        _
    $region6: #{tpu_custom_call.1} parent=1 // loop_footer
      %s22 = sadd.s32 1, %s18
    $region7: #{tpu_custom_call.1} parent=1 // loop_footer_branch
      %17 = sbr.rel target = $region3
    $region8: #{tpu_custom_call.1} parent=1 // loop_exit
      _
    %614 = vsyncpa [#allocation3], 1
    %s615 = scalar_lea.sflag [#allocation3], 1
    %616 = vsyncpa %s615, 1
    %617 = vsyncpa [#allocation4], 1
    %s618 = scalar_lea.sflag [#allocation4], 1
    %619 = vsyncpa %s618, 1

</llo_original>
